<compile_context>
chip_gen: v6e
topology: v6e:2x2x1
jax: 0.10.0
libtpu: 0.0.40
codegen_flags: <defaults>
</compile_context>

<pallas_src>
import functools

import numpy as np
import jax
import jax.numpy as jnp
from jax.experimental import pallas as pl
from jax.experimental.pallas import tpu as pltpu


def _round_up(n, m):
    return ((n + m - 1) // m) * m


def _embedding_kernel(x_ref, o_ref, *, freq_bands):
    """Compute [x, sin(f0 x), cos(f0 x), sin(f1 x), cos(f1 x), ...] for one tile.

    x_ref : VMEM (TB, C)                       input tile
    o_ref : VMEM (TB, C*(2*n_freqs+1))         output tile
    freq_bands : tuple of Python floats (compile-time constants)
    """
    x = x_ref[...].astype(jnp.float32)
    c = x.shape[-1]

    # Band-stacked pre-activation block: [f0*x | f1*x | ...]  -> (TB, F*C).
    # Multiplies are by immediates (freqs are compile-time constants).
    xf = jnp.concatenate([f * x for f in freq_bands], axis=-1)

    # One EUP stream each over all bands (instead of 2*F tiny pushes).
    s = jnp.sin(xf)
    co = jnp.cos(xf)

    # Interleave into the reference ordering [x, sin(f0 x), cos(f0 x), ...]
    # in registers, then emit a single wide (lane-dense) store.
    parts = [x]
    for k in range(len(freq_bands)):
        parts.append(s[:, k * c:(k + 1) * c])
        parts.append(co[:, k * c:(k + 1) * c])
    o_ref[...] = jnp.concatenate(parts, axis=-1).astype(o_ref.dtype)


def embedding_forward(x, freq_bands, *, tile_rows=4096, out_dtype=None):
    """x: (B, C) -> (B, C*(2*len(freq_bands)+1)).

    freq_bands: sequence of Python floats (baked into the kernel).
    tile_rows : batch-tile size (rounded to a multiple of 8). 4096 rows keeps
                the double-buffered tiles well under VMEM limits on all chips.
    out_dtype : output dtype (defaults to x.dtype); math is always f32.
    """
    B, C = x.shape
    n_freqs = len(freq_bands)
    out_channels = C * (2 * n_freqs + 1)
    out_dtype = x.dtype if out_dtype is None else out_dtype

    # Pick a batch tile: multiple of 8 (f32 sublane), no bigger than needed.
    TB = min(_round_up(tile_rows, 8), _round_up(max(B, 1), 8))
    B_pad = _round_up(max(B, 1), TB)
    if B_pad != B:
        x = jnp.pad(x, ((0, B_pad - B), (0, 0)))

    grid = (pl.cdiv(B_pad, TB),)

    kernel = functools.partial(
        _embedding_kernel, freq_bands=tuple(float(f) for f in freq_bands)
    )

    out = pl.pallas_call(
        kernel,
        out_shape=jax.ShapeDtypeStruct((B_pad, out_channels), out_dtype),
        grid=grid,
        in_specs=[pl.BlockSpec((TB, C), lambda i: (i, 0))],
        out_specs=pl.BlockSpec((TB, out_channels), lambda i: (i, 0)),
        compiler_params=pltpu.CompilerParams(
            dimension_semantics=("parallel",),
        ),
    )(x)

    return out[:B] if B_pad != B else out


class EmbeddingPallas:
    """Mirror of the PyTorch Embedding module's parameterization."""

    def __init__(self, in_channels, N_freqs, logscale=True):
        self.N_freqs = N_freqs
        self.in_channels = in_channels
        self.out_channels = in_channels * (2 * N_freqs + 1)
        if logscale:
            fb = 2.0 ** np.linspace(0.0, N_freqs - 1, N_freqs)
        else:
            fb = np.linspace(1.0, 2.0 ** (N_freqs - 1), N_freqs)
        fb = fb.astype(np.float32)
        # Compile-time constants baked into the kernel.
        self.freq_bands = tuple(float(f) for f in fb)

    def __call__(self, x, out_dtype=None):
        return embedding_forward(
            x.astype(jnp.float32),
            self.freq_bands,
            out_dtype=out_dtype,
        )


def _reference(x, freq_bands):
    """Pure-JAX reference matching the PyTorch forward exactly."""
    out = [x]
    for f in freq_bands:
        out.append(jnp.sin(f * x))
        out.append(jnp.cos(f * x))
    return jnp.concatenate(out, axis=-1)


if __name__ == "__main__":
    key = jax.random.PRNGKey(0)

    # Small shape consistent with the module: 8 points, 3 channels (xyz),
    # N_freqs=4 -> out_channels = 3*(2*4+1) = 27.
    B, in_channels, N_freqs = 8, 3, 4
    x = jax.random.normal(key, (B, in_channels), dtype=jnp.float32)

    emb = EmbeddingPallas(in_channels, N_freqs, logscale=True)
    out = jax.block_until_ready(emb(x))
    ref = _reference(x, emb.freq_bands)
    assert out.shape == (B, emb.out_channels), out.shape
    assert jnp.allclose(out, ref, atol=1e-5, rtol=1e-5), "mismatch vs reference"

    # Second check: ragged batch exercises the grid + padding path
    # (B not a multiple of the 8-row sublane tile).
    B2 = 1003
    x2 = jax.random.normal(jax.random.PRNGKey(1), (B2, in_channels), jnp.float32)
    out2 = jax.block_until_ready(emb(x2))
    ref2 = _reference(x2, emb.freq_bands)
    assert out2.shape == (B2, emb.out_channels), out2.shape
    assert jnp.allclose(out2, ref2, atol=1e-5, rtol=1e-5), "mismatch (ragged B)"

    print("KERNEL_OK")
</pallas_src>

<mosaic_0001>
module attributes {stable_mosaic.version = 11 : i64} {
  func.func @_embedding_kernel(%arg0: i32, %arg1: memref<8x3xf32, #tpu.memory_space<vmem>>, %arg2: memref<8x27xf32, #tpu.memory_space<vmem>>) attributes {dimension_semantics = [#tpu.dimension_semantics<parallel>], iteration_bounds = array<i64: 1>, scalar_prefetch = 0 : i64, scratch_operands = 0 : i64, tpu.core_type = #tpu.core_type<tc>, window_params = [{transform_indices = @transform_0, window_bounds = array<i64: 8, 3>}, {transform_indices = @transform_1, window_bounds = array<i64: 8, 27>}]} {
    %c0 = arith.constant 0 : index
    %c0_0 = arith.constant 0 : index
    %0 = vector.load %arg1[%c0, %c0_0] : memref<8x3xf32, #tpu.memory_space<vmem>>, vector<8x3xf32>
    %cst = arith.constant 1.000000e+00 : f32
    %1 = vector.broadcast %cst : f32 to vector<8x3xf32>
    %2 = arith.mulf %1, %0 : vector<8x3xf32>
    %cst_1 = arith.constant 2.000000e+00 : f32
    %3 = vector.broadcast %cst_1 : f32 to vector<8x3xf32>
    %4 = arith.mulf %3, %0 : vector<8x3xf32>
    %cst_2 = arith.constant 4.000000e+00 : f32
    %5 = vector.broadcast %cst_2 : f32 to vector<8x3xf32>
    %6 = arith.mulf %5, %0 : vector<8x3xf32>
    %cst_3 = arith.constant 8.000000e+00 : f32
    %7 = vector.broadcast %cst_3 : f32 to vector<8x3xf32>
    %8 = arith.mulf %7, %0 : vector<8x3xf32>
    %9 = tpu.concatenate %2, %4, %6, %8 in 1 : vector<8x3xf32>, vector<8x3xf32>, vector<8x3xf32>, vector<8x3xf32> -> vector<8x12xf32>
    %10 = math.sin %9 : vector<8x12xf32>
    %11 = math.cos %9 : vector<8x12xf32>
    %12 = vector.extract_strided_slice %10 {offsets = [0, 0], sizes = [8, 3], strides = [1, 1]} : vector<8x12xf32> to vector<8x3xf32>
    %13 = vector.extract_strided_slice %11 {offsets = [0, 0], sizes = [8, 3], strides = [1, 1]} : vector<8x12xf32> to vector<8x3xf32>
    %14 = vector.extract_strided_slice %10 {offsets = [0, 3], sizes = [8, 3], strides = [1, 1]} : vector<8x12xf32> to vector<8x3xf32>
    %15 = vector.extract_strided_slice %11 {offsets = [0, 3], sizes = [8, 3], strides = [1, 1]} : vector<8x12xf32> to vector<8x3xf32>
    %16 = vector.extract_strided_slice %10 {offsets = [0, 6], sizes = [8, 3], strides = [1, 1]} : vector<8x12xf32> to vector<8x3xf32>
    %17 = vector.extract_strided_slice %11 {offsets = [0, 6], sizes = [8, 3], strides = [1, 1]} : vector<8x12xf32> to vector<8x3xf32>
    %18 = vector.extract_strided_slice %10 {offsets = [0, 9], sizes = [8, 3], strides = [1, 1]} : vector<8x12xf32> to vector<8x3xf32>
    %19 = vector.extract_strided_slice %11 {offsets = [0, 9], sizes = [8, 3], strides = [1, 1]} : vector<8x12xf32> to vector<8x3xf32>
    %20 = tpu.concatenate %0, %12, %13, %14, %15, %16, %17, %18, %19 in 1 : vector<8x3xf32>, vector<8x3xf32>, vector<8x3xf32>, vector<8x3xf32>, vector<8x3xf32>, vector<8x3xf32>, vector<8x3xf32>, vector<8x3xf32>, vector<8x3xf32> -> vector<8x27xf32>
    %c0_4 = arith.constant 0 : index
    %c0_5 = arith.constant 0 : index
    %21 = vector.load %arg2[%c0_4, %c0_5] : memref<8x27xf32, #tpu.memory_space<vmem>>, vector<8x27xf32>
    tpu.vector_store %arg2[%c0_4, %c0_5], %20 {strides = array<i32>} : memref<8x27xf32, #tpu.memory_space<vmem>>, vector<8x27xf32>,
    return
  }
  func.func @transform_0(%arg0: i32) -> (i32, i32) {
    %c0_i32 = arith.constant 0 : i32
    %c0_i32_0 = arith.constant 0 : i32
    return %arg0, %c0_i32 : i32, i32
  }
  func.func @transform_1(%arg0: i32) -> (i32, i32) {
    %c0_i32 = arith.constant 0 : i32
    %c0_i32_0 = arith.constant 0 : i32
    return %arg0, %c0_i32 : i32, i32
  }
}

</mosaic_0001>

<llo_original>
// kernel: tpu_custom_call.1
$region0: #{tpu_custom_call.1}
  #allocation0 [shape = 'u32[]', space=smem, size = 0x4, offset = 0x4, fixed_abs, tag = 'smem constant byte address 0x4 - core index']
  #allocation1 [shape = 'u32[144,128]{1,0:T(1,128)}', space=vmem, size = 0x12000, scoped, tag = 'internal scratch']
  %s0 = inlined_call_operand.vmem [shape: f32[8,3], index: 0, kind: input, shape index: {}]
  %s1 = inlined_call_operand.hbm [shape: f32[8,27], index: 1, kind: output, shape index: {}]
  %s2 = sld [smem:[#allocation0]]
  $region14: #{tpu_custom_call.1} parent=0
    _
  %s4 = ssub.s32 1, %s2
  %s5 = scalar_select 0, %s4, %s2
  $region1: #{tpu_custom_call.1} parent=0
    #allocation2 [shape = 'u8[4096]{0}', space=vmem, size = 0x1000, scoped, tag = 'output window, operand 0, single buffered']
    #allocation3 [shape = 's32[1]{0}', space=sflag, size = 0x4, scoped, tag = 'scoped memory for tpu_custom_call.1']
    %6 = vsyncpa [#allocation3], 0
    // Predicated region
    $region2: #{tpu_custom_call.1} parent=1 // pred_check
      _
    $region3: #{tpu_custom_call.1} parent=1 // pred_check_branch
      %8 = sbr.rel (0) target = $region5
    $region4: #{tpu_custom_call.1} parent=1 // pred_region
      _
    $region5: #{tpu_custom_call.1} parent=1 // pred_fallthru
      _
    %v9 = vld [vmem:[%s0] sm:$0xff]
    %v10 = vmul.f32 %v9, 2.0
    %v11 = vmul.f32 %v9, 4.0
    %v12 = vmul.f32 %v9, 8.0
    %14 = vrot.lane.b32.xlu0 %v10, 3
    %v15 = vpop.permute.xlu0 %14
    %18 = vrot.lane.b32.xlu0 %v11, 6
    %v19 = vpop.permute.xlu0 %18
    %22 = vrot.lane.b32.xlu0 %v12, 9
    %v23 = vpop.permute.xlu0 %22
    %vm25 = vcmask 23552
    %v26 = vsel %vm25, %v9, %v15
    %vm27 = vcmask 48128
    %v28 = vsel %vm27, %v26, %v19
    %vm29 = vcmask 72704
    %v30 = vsel %vm29, %v28, %v23
    %v31 = vand.u32 2147483647, %v30
    %vm32 = vcmp.le.f32.partialorder %v31, 0.7853982
    %vm33 = vcmp.lt.s32.totalorder %v30, 0
    %v34 = vand.u32 %v30, 2139095040
    %v35 = vshrl.u32 %v34, 23
    %v36 = vsub.s32 %v35, 127
    %v37 = vand.u32 2147483647, %v30
    %v38 = vand.u32 %v37, 8388607
    %v39 = vor.u32 %v38, 8388608
    %v40 = vsub.s32 0, %v39
    %v41 = vadd.s32 %v36, 1
    %vm42 = vcmp.gt.s32.totalorder %v41, 0
    %v43 = vsel %vm42, %v41, 0
    %v44 = vshrl.u32 %v43, 5
    %v45 = vand.u32 %v43, 31
    %v46 = vsub.s32 32, %v45
    %v47 = vshrl.u32 683565275, %v46
    %v48 = vshll.u32 683565275, %v45
    %v49 = vshrl.u32 2475754826, %v46
    %v50 = vor.u32 %v48, %v49
    %v51 = vshll.u32 2475754826, %v45
    %v52 = vshrl.u32 2131351028, %v46
    %v53 = vor.u32 %v51, %v52
    %v54 = vshll.u32 2131351028, %v45
    %v55 = vshrl.u32 2102212464, %v46
    %v56 = vor.u32 %v54, %v55
    %v57 = vshll.u32 2102212464, %v45
    %v58 = vshrl.u32 920167782, %v46
    %v59 = vor.u32 %v57, %v58
    %v60 = vshll.u32 920167782, %v45
    %v61 = vshrl.u32 1326507024, %v46
    %v62 = vor.u32 %v60, %v61
    %vm63 = vcmp.lt.s32.totalorder %v44, 1
    %vm64 = vcmp.lt.s32.totalorder %v44, 2
    %vm65 = vcmp.lt.s32.totalorder %v44, 3
    %vm66 = vcmp.lt.s32.totalorder %v44, 4
    %v67 = vsel %vm63, %v47, %v50
    %v68 = vsel %vm66, %v56, 2102212464
    %v69 = vsel %vm65, %v53, %v68
    %v70 = vsel %vm64, %v67, %v69
    %v71 = vsel %vm63, %v50, %v53
    %v72 = vsel %vm66, %v59, 920167782
    %v73 = vsel %vm65, %v56, %v72
    %v74 = vsel %vm64, %v71, %v73
    %v75 = vsel %vm63, %v53, %v56
    %v76 = vsel %vm66, %v62, 1326507024
    %v77 = vsel %vm65, %v59, %v76
    %v78 = vsel %vm64, %v75, %v77
    %v79 = vshll.u32 %v39, 8
    %v80 = vmul.u32.u64.compose %v79, %v78
    %v81 = vextract.low.u32 %v80
    %v82 = vextract.high.u32 %v80
    %v83 = vmul.u32.u64.compose %v79, %v74
    %v84 = vextract.low.u32 %v83
    %v85 = vextract.high.u32 %v83
    %v86 = vmul.u32 %v79, %v70
    %v87 = vadd.s32 %v82, %v84
    %vm88 = vc.u32 %v82, %v84
    %v89 = vadd.s32 %v85, 1
    %v90 = vsel %vm88, %v89, %v85
    %v91 = vadd.s32 %v86, %v90
    %v92 = vadd.s32 %v91, 536870912
    %v93 = vshrl.u32 %v92, 30
    %v94 = vshll.u32 %v93, 30
    %v95 = vsub.s32 %v91, %v94
    %vm96 = vcmp.lt.s32.totalorder %v95, 0
    %v97 = vsub.s32 0, %v95
    %v98 = vsel %vm96, %v97, %v95
    %v99 = vclz %v98
    %v100 = vsub.s32 %v99, 2
    %vm101 = vcmp.gt.s32.totalorder 0, %v100
    %v102 = vsel %vm101, 0, %v100
    %v103 = vsub.s32 32, %v102
    %v104 = vshll.u32 %v95, %v102
    %v105 = vshrl.u32 %v87, %v103
    %v106 = vor.u32 %v104, %v105
    %v107 = vsub.s32 4294967266, %v102
    %v108 = vadd.s32 %v107, 127
    %v109 = vshll.u32 %v108, 23
    %v110 = vor.u32 4788187, %v109
    %v111 = vand.u32 2147483647, %v110
    %v113 = vcvt.s32.f32 %v106
    %v114 = vmul.f32 %v113, %v111
    %v115 = vxor.u32 %v114, 2147483648
    %v116 = vsel %vm33, %v115, %v114
    %v117 = vsub.s32 4, %v93
    %v118 = vsel %vm33, %v117, %v93
    %v119 = vsel %vm32, %v30, %v116
    %v120 = vsel %vm32, 0, %v118
    %v121 = vcosq.f32.pop %v119
    %v122 = vsinq.f32.pop %v119
    %vm123 = vweird.f32 %v30
    %v124 = vadd.s32 %v120, 3
    %v125 = vand.u32 %v124, 3
    %vm126 = vcmp.lt.s32.totalorder %v125, 2
    %vm127 = vcmp.eq.s32.totalorder %v125, 0
    %v128 = vxor.u32 %v122, 2147483648
    %v129 = vsel %vm127, %v121, %v128
    %vm130 = vcmp.eq.s32.totalorder %v125, 2
    %v131 = vxor.u32 %v121, 2147483648
    %v132 = vsel %vm130, %v131, %v122
    %v133 = vsel %vm126, %v129, %v132
    %v134 = vsel %vm123, nan, %v133
    %v135 = vand.u32 2147483647, %v30
    %vm136 = vcmp.le.f32.partialorder %v135, 0.7853982
    %vm137 = vcmp.lt.s32.totalorder %v30, 0
    %v138 = vand.u32 %v30, 2139095040
    %v139 = vshrl.u32 %v138, 23
    %v140 = vsub.s32 %v139, 127
    %v141 = vand.u32 2147483647, %v30
    %v142 = vand.u32 %v141, 8388607
    %v143 = vor.u32 %v142, 8388608
    %v144 = vsub.s32 0, %v143
    %v145 = vadd.s32 %v140, 1
    %vm146 = vcmp.gt.s32.totalorder %v145, 0
    %v147 = vsel %vm146, %v145, 0
    %v148 = vshrl.u32 %v147, 5
    %v149 = vand.u32 %v147, 31
    %v150 = vsub.s32 32, %v149
    %v151 = vshrl.u32 683565275, %v150
    %v152 = vshll.u32 683565275, %v149
    %v153 = vshrl.u32 2475754826, %v150
    %v154 = vor.u32 %v152, %v153
    %v155 = vshll.u32 2475754826, %v149
    %v156 = vshrl.u32 2131351028, %v150
    %v157 = vor.u32 %v155, %v156
    %v158 = vshll.u32 2131351028, %v149
    %v159 = vshrl.u32 2102212464, %v150
    %v160 = vor.u32 %v158, %v159
    %v161 = vshll.u32 2102212464, %v149
    %v162 = vshrl.u32 920167782, %v150
    %v163 = vor.u32 %v161, %v162
    %v164 = vshll.u32 920167782, %v149
    %v165 = vshrl.u32 1326507024, %v150
    %v166 = vor.u32 %v164, %v165
    %vm167 = vcmp.lt.s32.totalorder %v148, 1
    %vm168 = vcmp.lt.s32.totalorder %v148, 2
    %vm169 = vcmp.lt.s32.totalorder %v148, 3
    %vm170 = vcmp.lt.s32.totalorder %v148, 4
    %v171 = vsel %vm167, %v151, %v154
    %v172 = vsel %vm170, %v160, 2102212464
    %v173 = vsel %vm169, %v157, %v172
    %v174 = vsel %vm168, %v171, %v173
    %v175 = vsel %vm167, %v154, %v157
    %v176 = vsel %vm170, %v163, 920167782
    %v177 = vsel %vm169, %v160, %v176
    %v178 = vsel %vm168, %v175, %v177
    %v179 = vsel %vm167, %v157, %v160
    %v180 = vsel %vm170, %v166, 1326507024
    %v181 = vsel %vm169, %v163, %v180
    %v182 = vsel %vm168, %v179, %v181
    %v183 = vshll.u32 %v143, 8
    %v184 = vmul.u32.u64.compose %v183, %v182
    %v185 = vextract.low.u32 %v184
    %v186 = vextract.high.u32 %v184
    %v187 = vmul.u32.u64.compose %v183, %v178
    %v188 = vextract.low.u32 %v187
    %v189 = vextract.high.u32 %v187
    %v190 = vmul.u32 %v183, %v174
    %v191 = vadd.s32 %v186, %v188
    %vm192 = vc.u32 %v186, %v188
    %v193 = vadd.s32 %v189, 1
    %v194 = vsel %vm192, %v193, %v189
    %v195 = vadd.s32 %v190, %v194
    %v196 = vadd.s32 %v195, 536870912
    %v197 = vshrl.u32 %v196, 30
    %v198 = vshll.u32 %v197, 30
    %v199 = vsub.s32 %v195, %v198
    %vm200 = vcmp.lt.s32.totalorder %v199, 0
    %v201 = vsub.s32 0, %v199
    %v202 = vsel %vm200, %v201, %v199
    %v203 = vclz %v202
    %v204 = vsub.s32 %v203, 2
    %vm205 = vcmp.gt.s32.totalorder 0, %v204
    %v206 = vsel %vm205, 0, %v204
    %v207 = vsub.s32 32, %v206
    %v208 = vshll.u32 %v199, %v206
    %v209 = vshrl.u32 %v191, %v207
    %v210 = vor.u32 %v208, %v209
    %v211 = vsub.s32 4294967266, %v206
    %v212 = vadd.s32 %v211, 127
    %v213 = vshll.u32 %v212, 23
    %v214 = vor.u32 4788187, %v213
    %v215 = vand.u32 2147483647, %v214
    %v217 = vcvt.s32.f32 %v210
    %v218 = vmul.f32 %v217, %v215
    %v219 = vxor.u32 %v218, 2147483648
    %v220 = vsel %vm137, %v219, %v218
    %v221 = vsub.s32 4, %v197
    %v222 = vsel %vm137, %v221, %v197
    %v223 = vsel %vm136, %v30, %v220
    %v224 = vsel %vm136, 0, %v222
    %v225 = vcosq.f32.pop %v223
    %v226 = vsinq.f32.pop %v223
    %vm227 = vweird.f32 %v30
    %v228 = vand.u32 %v224, 3
    %vm229 = vcmp.lt.s32.totalorder %v228, 2
    %vm230 = vcmp.eq.s32.totalorder %v228, 0
    %v231 = vxor.u32 %v226, 2147483648
    %v232 = vsel %vm230, %v225, %v231
    %vm233 = vcmp.eq.s32.totalorder %v228, 2
    %v234 = vxor.u32 %v225, 2147483648
    %v235 = vsel %vm233, %v234, %v226
    %v236 = vsel %vm229, %v232, %v235
    %v237 = vsel %vm227, nan, %v236
    %239 = vrot.lane.b32.xlu0 %v134, 3
    %v240 = vpop.permute.xlu0 %239
    %243 = vrot.lane.b32.xlu0 %v237, 6
    %v244 = vpop.permute.xlu0 %243
    %246 = vrot.lane.b32.xlu0 %v134, 6
    %v247 = vpop.permute.xlu0 %246
    %249 = vrot.lane.b32.xlu0 %v237, 9
    %v250 = vpop.permute.xlu0 %249
    %252 = vrot.lane.b32.xlu0 %v134, 9
    %v253 = vpop.permute.xlu0 %252
    %255 = vrot.lane.b32.xlu0 %v237, 12
    %v256 = vpop.permute.xlu0 %255
    %258 = vrot.lane.b32.xlu0 %v134, 12
    %v259 = vpop.permute.xlu0 %258
    %261 = vrot.lane.b32.xlu0 %v237, 15
    %v262 = vpop.permute.xlu0 %261
    %v264 = vsel %vm25, %v9, %v240
    %v265 = vsel %vm27, %v264, %v244
    %v266 = vsel %vm29, %v265, %v247
    %vm267 = vcmask 97280
    %v268 = vsel %vm267, %v266, %v250
    %vm269 = vcmask 121856
    %v270 = vsel %vm269, %v268, %v253
    %vm271 = vcmask 146432
    %v272 = vsel %vm271, %v270, %v256
    %vm273 = vcmask 171008
    %v274 = vsel %vm273, %v272, %v259
    %vm275 = vcmask 195584
    %v276 = vsel %vm275, %v274, %v262
    %vm277 = vcmask 220160
    %278 = vst.msk [vmem:[#allocation2] sm:$0xff] %vm277, %v276
    // Predicated region
    $region6: #{tpu_custom_call.1} parent=1 // pred_check
      _
    $region7: #{tpu_custom_call.1} parent=1 // pred_check_branch
      %280 = sbr.rel (0) target = $region9
    $region8: #{tpu_custom_call.1} parent=1 // pred_region
      %s282 = ssub.s32 128, 128
      %283 = vsyncadd [#allocation3], %s282
      %s285 = sshll.u32 [#allocation2], 4
      %s286 = int_to_ptr.vmem [resolvable:$true] %s285
      %288 = dma.vmem_to_hbm [thread:$0]  %s286, 128, %s1, [#allocation3]
    $region9: #{tpu_custom_call.1} parent=1 // pred_fallthru
      _
    // Predicated region
    $region10: #{tpu_custom_call.1} parent=1 // pred_check
      _
    $region11: #{tpu_custom_call.1} parent=1 // pred_check_branch
      %290 = sbr.rel (0) target = $region13
    $region12: #{tpu_custom_call.1} parent=1 // pred_region
      %291 = dma.done [#allocation3], 128
    $region13: #{tpu_custom_call.1} parent=1 // pred_fallthru
      _
    %292 = vsyncpa [#allocation3], 1

</llo_original>
